<compile_context>
chip_gen: v7x
topology: tpu7x:2x2x1
jax: 0.10.0
libtpu: 0.0.40
codegen_flags: <defaults>
</compile_context>

<pallas_src>
import jax
import jax.numpy as jnp
from jax import lax
from jax.experimental import pallas as pl
from jax.experimental.pallas import tpu as pltpu


def _lstm_kernel(x_ref, r_ref, wx_ref, wr_ref, wh_ref, b_ref, out_ref):
    # x_ref : (T*B, obs_dim)     r_ref : (T*B, 1)
    # wx_ref: (obs_dim, 4*H)     wr_ref: (1, 4*H)
    # wh_ref: (H, 4*H)           b_ref : (1, 4*H)   (b_ih + b_hh, pre-summed)
    # out_ref: (B, H)
    TB = x_ref.shape[0]
    B, H = out_ref.shape
    T = TB // B

    # Hoisted input-side projection for every timestep in one small MXU pass:
    #   gx[t*B:(t+1)*B] = state_t @ W_state + reward_t * w_reward + (b_ih + b_hh)
    # Shape (T*B, 4H) -> register resident at these shapes (8 vregs of f32).
    gx = (
        jnp.dot(x_ref[...], wx_ref[...], preferred_element_type=jnp.float32)
        + r_ref[...] * wr_ref[...]
        + b_ref[...]
    )

    # Loop-invariant recurrent weight: load from VMEM once, keep in registers.
    wh = wh_ref[...]  # (H, 4H) = 4 vregs at H=32

    h = jnp.zeros((B, H), jnp.float32)
    c = jnp.zeros((B, H), jnp.float32)

    # TODO(synk): for very long rollouts (large T), move the recurrence onto a
    # T grid axis (marked "arbitrary", h/c in persistent scratch) instead of a
    # full unroll, and chunk gx, to bound unroll size / VMEM on v7x.
    for t in range(T):
        # Packed pre-activations for all 4 gates: (B, 4H) = one vreg at H=32.
        g = gx[t * B:(t + 1) * B, :] + jnp.dot(
            h, wh, preferred_element_type=jnp.float32
        )
        # PyTorch LSTM gate order: [i, f, g, o] along the packed 4H lanes.
        i_g = jax.nn.sigmoid(g[:, 0 * H:1 * H])
        f_g = jax.nn.sigmoid(g[:, 1 * H:2 * H])
        g_g = jnp.tanh(g[:, 2 * H:3 * H])
        o_g = jax.nn.sigmoid(g[:, 3 * H:4 * H])
        c = f_g * c + i_g * g_g
        h = o_g * jnp.tanh(c)

    # Module returns c_n.squeeze(0): the final cell state.
    out_ref[...] = c.astype(out_ref.dtype)


def lstm_rollout_encoder_forward(state, reward, params):
    """Pallas implementation of LSTMRolloutEncoder.forward.

    state  : (T, B, obs_dim) float32
    reward : (T, B, 1)       float32
    returns: (B, hidden)     float32   (final cell state c_n.squeeze(0))
    Precondition: T >= 1.
    """
    T, B, obs_dim = state.shape
    H = params["weight_hh"].shape[1]

    # PyTorch layouts: weight_ih (4H, obs_dim+1), weight_hh (4H, H).
    w_ih = params["weight_ih"].astype(jnp.float32)
    w_hh = params["weight_hh"].astype(jnp.float32)
    b = (params["bias_ih"] + params["bias_hh"]).astype(jnp.float32).reshape(1, 4 * H)

    wx = w_ih[:, :obs_dim].T   # (obs_dim, 4H)  -- state part of W_ih
    wr = w_ih[:, obs_dim:].T   # (1, 4H)        -- reward row of W_ih
    wh = w_hh.T                # (H, 4H)        -- tightly packed, no padding

    # Free, contiguous reshapes (no concat, no extra HBM round trip).
    x2d = state.reshape(T * B, obs_dim).astype(jnp.float32)
    r2d = reward.reshape(T * B, 1).astype(jnp.float32)

    # TODO(synk): on v7x with large B, add a leading "parallel" batch-tile grid
    # axis so the two TensorCores split the batch; unnecessary at B<=8.
    out = pl.pallas_call(
        _lstm_kernel,
        out_shape=jax.ShapeDtypeStruct((B, H), jnp.float32),
        grid=(1,),
        in_specs=[
            pl.BlockSpec((T * B, obs_dim), lambda i: (0, 0)),  # state (all timesteps)
            pl.BlockSpec((T * B, 1), lambda i: (0, 0)),         # reward (all timesteps)
            pl.BlockSpec((obs_dim, 4 * H), lambda i: (0, 0)),   # W_state^T
            pl.BlockSpec((1, 4 * H), lambda i: (0, 0)),         # w_reward
            pl.BlockSpec((H, 4 * H), lambda i: (0, 0)),         # W_hh^T (packed)
            pl.BlockSpec((1, 4 * H), lambda i: (0, 0)),         # b_ih + b_hh
        ],
        out_specs=pl.BlockSpec((B, H), lambda i: (0, 0)),
        compiler_params=pltpu.CompilerParams(
            dimension_semantics=("arbitrary",),
        ),
    )(x2d, r2d, wx, wr, wh, b)
    return out


def init_params(key, obs_dim, hidden_size):
    """PyTorch-style LSTM init: uniform(-1/sqrt(H), 1/sqrt(H)), packed gate order [i,f,g,o]."""
    din = obs_dim + 1
    k = 1.0 / jnp.sqrt(jnp.float32(hidden_size))
    k1, k2, k3, k4 = jax.random.split(key, 4)
    return {
        "weight_ih": jax.random.uniform(k1, (4 * hidden_size, din), jnp.float32, -k, k),
        "weight_hh": jax.random.uniform(k2, (4 * hidden_size, hidden_size), jnp.float32, -k, k),
        "bias_ih": jax.random.uniform(k3, (4 * hidden_size,), jnp.float32, -k, k),
        "bias_hh": jax.random.uniform(k4, (4 * hidden_size,), jnp.float32, -k, k),
    }


def lstm_rollout_encoder_reference(state, reward, params):
    """Pure-JAX reference (lax.scan LSTM) matching PyTorch nn.LSTM; returns final c_n."""
    x = jnp.concatenate([state, reward], axis=2).astype(jnp.float32)
    w_ih, w_hh = params["weight_ih"], params["weight_hh"]
    b_ih, b_hh = params["bias_ih"], params["bias_hh"]
    H = w_hh.shape[1]
    B = x.shape[1]
    prec = jax.lax.Precision.HIGHEST

    def step(carry, x_t):
        h, c = carry
        gates = (jnp.dot(x_t, w_ih.T, precision=prec) + b_ih
                 + jnp.dot(h, w_hh.T, precision=prec) + b_hh)
        i = jax.nn.sigmoid(gates[:, 0:H])
        f = jax.nn.sigmoid(gates[:, H:2 * H])
        g = jnp.tanh(gates[:, 2 * H:3 * H])
        o = jax.nn.sigmoid(gates[:, 3 * H:4 * H])
        c_new = f * c + i * g
        h_new = o * jnp.tanh(c_new)
        return (h_new, c_new), None

    h0 = jnp.zeros((B, H), jnp.float32)
    c0 = jnp.zeros((B, H), jnp.float32)
    (_, c_f), _ = lax.scan(step, (h0, c0), x)
    return c_f


if __name__ == "__main__":
    # Small shapes consistent with the module: obs_dim=(4,), hidden_size=32,
    # rollout length T=8, batch B=8.
    T, B, OBS_DIM, HIDDEN = 8, 8, 4, 32

    key = jax.random.PRNGKey(0)
    k_state, k_rew, k_params = jax.random.split(key, 3)

    state = jax.random.normal(k_state, (T, B, OBS_DIM), jnp.float32)
    reward = jax.random.normal(k_rew, (T, B, 1), jnp.float32)
    params = init_params(k_params, OBS_DIM, HIDDEN)

    out = lstm_rollout_encoder_forward(state, reward, params)
    out = jax.block_until_ready(out)

    ref = lstm_rollout_encoder_reference(state, reward, params)
    assert out.shape == (B, HIDDEN)
    err = float(jnp.max(jnp.abs(out - ref)))
    assert err < 1e-3, f"mismatch vs JAX reference: max abs err = {err}"

    print("KERNEL_OK")
</pallas_src>

<mosaic_0001>
module attributes {stable_mosaic.version = 11 : i64} {
  func.func @_lstm_kernel(%arg0: i32, %arg1: memref<64x4xf32, #tpu.memory_space<vmem>>, %arg2: memref<64x1xf32, #tpu.memory_space<vmem>>, %arg3: memref<4x128xf32, #tpu.memory_space<vmem>>, %arg4: memref<1x128xf32, #tpu.memory_space<vmem>>, %arg5: memref<32x128xf32, #tpu.memory_space<vmem>>, %arg6: memref<1x128xf32, #tpu.memory_space<vmem>>, %arg7: memref<8x32xf32, #tpu.memory_space<vmem>>) attributes {dimension_semantics = [#tpu.dimension_semantics<arbitrary>], iteration_bounds = array<i64: 1>, scalar_prefetch = 0 : i64, scratch_operands = 0 : i64, tpu.core_type = #tpu.core_type<tc>, window_params = [{pipeline_mode = #tpu.pipeline_mode<synchronous>, transform_indices = @transform_0, window_bounds = array<i64: 64, 4>}, {pipeline_mode = #tpu.pipeline_mode<synchronous>, transform_indices = @transform_1, window_bounds = array<i64: 64, 1>}, {pipeline_mode = #tpu.pipeline_mode<synchronous>, transform_indices = @transform_2, window_bounds = array<i64: 4, 128>}, {pipeline_mode = #tpu.pipeline_mode<synchronous>, transform_indices = @transform_3, window_bounds = array<i64: 1, 128>}, {pipeline_mode = #tpu.pipeline_mode<synchronous>, transform_indices = @transform_4, window_bounds = array<i64: 32, 128>}, {pipeline_mode = #tpu.pipeline_mode<synchronous>, transform_indices = @transform_5, window_bounds = array<i64: 1, 128>}, {pipeline_mode = #tpu.pipeline_mode<synchronous>, transform_indices = @transform_6, window_bounds = array<i64: 8, 32>}]} {
    %c0 = arith.constant 0 : index
    %c0_0 = arith.constant 0 : index
    %0 = vector.load %arg1[%c0, %c0_0] : memref<64x4xf32, #tpu.memory_space<vmem>>, vector<64x4xf32>
    %c0_1 = arith.constant 0 : index
    %c0_2 = arith.constant 0 : index
    %1 = vector.load %arg3[%c0_1, %c0_2] : memref<4x128xf32, #tpu.memory_space<vmem>>, vector<4x128xf32>
    %cst = arith.constant dense<0.000000e+00> : vector<64x128xf32>
    %2 = tpu.matmul %0, %1, %cst {dimension_numbers = #tpu.dot_dimension_numbers<[1], [0], [0], [1], [0, 0, 1, 1], [], []>} : vector<64x4xf32>, vector<4x128xf32>, vector<64x128xf32> -> vector<64x128xf32>
    %c0_3 = arith.constant 0 : index
    %c0_4 = arith.constant 0 : index
    %3 = vector.load %arg2[%c0_3, %c0_4] : memref<64x1xf32, #tpu.memory_space<vmem>>, vector<64x1xf32>
    %c0_5 = arith.constant 0 : index
    %c0_6 = arith.constant 0 : index
    %4 = vector.load %arg4[%c0_5, %c0_6] : memref<1x128xf32, #tpu.memory_space<vmem>>, vector<1x128xf32>
    %5 = vector.broadcast %3 : vector<64x1xf32> to vector<64x128xf32>
    %6 = vector.broadcast %4 : vector<1x128xf32> to vector<64x128xf32>
    %7 = arith.mulf %5, %6 : vector<64x128xf32>
    %8 = arith.addf %2, %7 : vector<64x128xf32>
    %c0_7 = arith.constant 0 : index
    %c0_8 = arith.constant 0 : index
    %9 = vector.load %arg6[%c0_7, %c0_8] : memref<1x128xf32, #tpu.memory_space<vmem>>, vector<1x128xf32>
    %10 = vector.broadcast %9 : vector<1x128xf32> to vector<64x128xf32>
    %11 = arith.addf %8, %10 : vector<64x128xf32>
    %c0_9 = arith.constant 0 : index
    %c0_10 = arith.constant 0 : index
    %12 = vector.load %arg5[%c0_9, %c0_10] : memref<32x128xf32, #tpu.memory_space<vmem>>, vector<32x128xf32>
    %cst_11 = arith.constant 0.000000e+00 : f32
    %13 = vector.broadcast %cst_11 : f32 to vector<8x32xf32>
    %cst_12 = arith.constant 0.000000e+00 : f32
    %14 = vector.broadcast %cst_12 : f32 to vector<8x32xf32>
    %15 = vector.extract_strided_slice %11 {offsets = [0, 0], sizes = [8, 128], strides = [1, 1]} : vector<64x128xf32> to vector<8x128xf32>
    %cst_13 = arith.constant dense<0.000000e+00> : vector<8x128xf32>
    %16 = tpu.matmul %13, %12, %cst_13 {dimension_numbers = #tpu.dot_dimension_numbers<[1], [0], [0], [1], [0, 0, 1, 1], [], []>} : vector<8x32xf32>, vector<32x128xf32>, vector<8x128xf32> -> vector<8x128xf32>
    %17 = arith.addf %15, %16 : vector<8x128xf32>
    %18 = vector.extract_strided_slice %17 {offsets = [0, 0], sizes = [8, 32], strides = [1, 1]} : vector<8x128xf32> to vector<8x32xf32>
    %19 = arith.negf %18 : vector<8x32xf32>
    %20 = math.exp %19 : vector<8x32xf32>
    %cst_14 = arith.constant 1.000000e+00 : f32
    %21 = vector.broadcast %cst_14 : f32 to vector<8x32xf32>
    %22 = arith.addf %21, %20 : vector<8x32xf32>
    %23 = arith.divf %21, %22 : vector<8x32xf32>
    %24 = vector.extract_strided_slice %17 {offsets = [0, 32], sizes = [8, 32], strides = [1, 1]} : vector<8x128xf32> to vector<8x32xf32>
    %25 = arith.negf %24 : vector<8x32xf32>
    %26 = math.exp %25 : vector<8x32xf32>
    %cst_15 = arith.constant 1.000000e+00 : f32
    %27 = vector.broadcast %cst_15 : f32 to vector<8x32xf32>
    %28 = arith.addf %27, %26 : vector<8x32xf32>
    %29 = arith.divf %27, %28 : vector<8x32xf32>
    %30 = vector.extract_strided_slice %17 {offsets = [0, 64], sizes = [8, 32], strides = [1, 1]} : vector<8x128xf32> to vector<8x32xf32>
    %31 = math.tanh %30 : vector<8x32xf32>
    %32 = vector.extract_strided_slice %17 {offsets = [0, 96], sizes = [8, 32], strides = [1, 1]} : vector<8x128xf32> to vector<8x32xf32>
    %33 = arith.negf %32 : vector<8x32xf32>
    %34 = math.exp %33 : vector<8x32xf32>
    %cst_16 = arith.constant 1.000000e+00 : f32
    %35 = vector.broadcast %cst_16 : f32 to vector<8x32xf32>
    %36 = arith.addf %35, %34 : vector<8x32xf32>
    %37 = arith.divf %35, %36 : vector<8x32xf32>
    %38 = arith.mulf %29, %14 : vector<8x32xf32>
    %39 = arith.mulf %23, %31 : vector<8x32xf32>
    %40 = arith.addf %38, %39 : vector<8x32xf32>
    %41 = math.tanh %40 : vector<8x32xf32>
    %42 = arith.mulf %37, %41 : vector<8x32xf32>
    %43 = vector.extract_strided_slice %11 {offsets = [8, 0], sizes = [8, 128], strides = [1, 1]} : vector<64x128xf32> to vector<8x128xf32>
    %cst_17 = arith.constant dense<0.000000e+00> : vector<8x128xf32>
    %44 = tpu.matmul %42, %12, %cst_17 {dimension_numbers = #tpu.dot_dimension_numbers<[1], [0], [0], [1], [0, 0, 1, 1], [], []>} : vector<8x32xf32>, vector<32x128xf32>, vector<8x128xf32> -> vector<8x128xf32>
    %45 = arith.addf %43, %44 : vector<8x128xf32>
    %46 = vector.extract_strided_slice %45 {offsets = [0, 0], sizes = [8, 32], strides = [1, 1]} : vector<8x128xf32> to vector<8x32xf32>
    %47 = arith.negf %46 : vector<8x32xf32>
    %48 = math.exp %47 : vector<8x32xf32>
    %cst_18 = arith.constant 1.000000e+00 : f32
    %49 = vector.broadcast %cst_18 : f32 to vector<8x32xf32>
    %50 = arith.addf %49, %48 : vector<8x32xf32>
    %51 = arith.divf %49, %50 : vector<8x32xf32>
    %52 = vector.extract_strided_slice %45 {offsets = [0, 32], sizes = [8, 32], strides = [1, 1]} : vector<8x128xf32> to vector<8x32xf32>
    %53 = arith.negf %52 : vector<8x32xf32>
    %54 = math.exp %53 : vector<8x32xf32>
    %cst_19 = arith.constant 1.000000e+00 : f32
    %55 = vector.broadcast %cst_19 : f32 to vector<8x32xf32>
    %56 = arith.addf %55, %54 : vector<8x32xf32>
    %57 = arith.divf %55, %56 : vector<8x32xf32>
    %58 = vector.extract_strided_slice %45 {offsets = [0, 64], sizes = [8, 32], strides = [1, 1]} : vector<8x128xf32> to vector<8x32xf32>
    %59 = math.tanh %58 : vector<8x32xf32>
    %60 = vector.extract_strided_slice %45 {offsets = [0, 96], sizes = [8, 32], strides = [1, 1]} : vector<8x128xf32> to vector<8x32xf32>
    %61 = arith.negf %60 : vector<8x32xf32>
    %62 = math.exp %61 : vector<8x32xf32>
    %cst_20 = arith.constant 1.000000e+00 : f32
    %63 = vector.broadcast %cst_20 : f32 to vector<8x32xf32>
    %64 = arith.addf %63, %62 : vector<8x32xf32>
    %65 = arith.divf %63, %64 : vector<8x32xf32>
    %66 = arith.mulf %57, %40 : vector<8x32xf32>
    %67 = arith.mulf %51, %59 : vector<8x32xf32>
    %68 = arith.addf %66, %67 : vector<8x32xf32>
    %69 = math.tanh %68 : vector<8x32xf32>
    %70 = arith.mulf %65, %69 : vector<8x32xf32>
    %71 = vector.extract_strided_slice %11 {offsets = [16, 0], sizes = [8, 128], strides = [1, 1]} : vector<64x128xf32> to vector<8x128xf32>
    %cst_21 = arith.constant dense<0.000000e+00> : vector<8x128xf32>
    %72 = tpu.matmul %70, %12, %cst_21 {dimension_numbers = #tpu.dot_dimension_numbers<[1], [0], [0], [1], [0, 0, 1, 1], [], []>} : vector<8x32xf32>, vector<32x128xf32>, vector<8x128xf32> -> vector<8x128xf32>
    %73 = arith.addf %71, %72 : vector<8x128xf32>
    %74 = vector.extract_strided_slice %73 {offsets = [0, 0], sizes = [8, 32], strides = [1, 1]} : vector<8x128xf32> to vector<8x32xf32>
    %75 = arith.negf %74 : vector<8x32xf32>
    %76 = math.exp %75 : vector<8x32xf32>
    %cst_22 = arith.constant 1.000000e+00 : f32
    %77 = vector.broadcast %cst_22 : f32 to vector<8x32xf32>
    %78 = arith.addf %77, %76 : vector<8x32xf32>
    %79 = arith.divf %77, %78 : vector<8x32xf32>
    %80 = vector.extract_strided_slice %73 {offsets = [0, 32], sizes = [8, 32], strides = [1, 1]} : vector<8x128xf32> to vector<8x32xf32>
    %81 = arith.negf %80 : vector<8x32xf32>
    %82 = math.exp %81 : vector<8x32xf32>
    %cst_23 = arith.constant 1.000000e+00 : f32
    %83 = vector.broadcast %cst_23 : f32 to vector<8x32xf32>
    %84 = arith.addf %83, %82 : vector<8x32xf32>
    %85 = arith.divf %83, %84 : vector<8x32xf32>
    %86 = vector.extract_strided_slice %73 {offsets = [0, 64], sizes = [8, 32], strides = [1, 1]} : vector<8x128xf32> to vector<8x32xf32>
    %87 = math.tanh %86 : vector<8x32xf32>
    %88 = vector.extract_strided_slice %73 {offsets = [0, 96], sizes = [8, 32], strides = [1, 1]} : vector<8x128xf32> to vector<8x32xf32>
    %89 = arith.negf %88 : vector<8x32xf32>
    %90 = math.exp %89 : vector<8x32xf32>
    %cst_24 = arith.constant 1.000000e+00 : f32
    %91 = vector.broadcast %cst_24 : f32 to vector<8x32xf32>
    %92 = arith.addf %91, %90 : vector<8x32xf32>
    %93 = arith.divf %91, %92 : vector<8x32xf32>
    %94 = arith.mulf %85, %68 : vector<8x32xf32>
    %95 = arith.mulf %79, %87 : vector<8x32xf32>
    %96 = arith.addf %94, %95 : vector<8x32xf32>
    %97 = math.tanh %96 : vector<8x32xf32>
    %98 = arith.mulf %93, %97 : vector<8x32xf32>
    %99 = vector.extract_strided_slice %11 {offsets = [24, 0], sizes = [8, 128], strides = [1, 1]} : vector<64x128xf32> to vector<8x128xf32>
    %cst_25 = arith.constant dense<0.000000e+00> : vector<8x128xf32>
    %100 = tpu.matmul %98, %12, %cst_25 {dimension_numbers = #tpu.dot_dimension_numbers<[1], [0], [0], [1], [0, 0, 1, 1], [], []>} : vector<8x32xf32>, vector<32x128xf32>, vector<8x128xf32> -> vector<8x128xf32>
    %101 = arith.addf %99, %100 : vector<8x128xf32>
    %102 = vector.extract_strided_slice %101 {offsets = [0, 0], sizes = [8, 32], strides = [1, 1]} : vector<8x128xf32> to vector<8x32xf32>
    %103 = arith.negf %102 : vector<8x32xf32>
    %104 = math.exp %103 : vector<8x32xf32>
    %cst_26 = arith.constant 1.000000e+00 : f32
    %105 = vector.broadcast %cst_26 : f32 to vector<8x32xf32>
    %106 = arith.addf %105, %104 : vector<8x32xf32>
    %107 = arith.divf %105, %106 : vector<8x32xf32>
    %108 = vector.extract_strided_slice %101 {offsets = [0, 32], sizes = [8, 32], strides = [1, 1]} : vector<8x128xf32> to vector<8x32xf32>
    %109 = arith.negf %108 : vector<8x32xf32>
    %110 = math.exp %109 : vector<8x32xf32>
    %cst_27 = arith.constant 1.000000e+00 : f32
    %111 = vector.broadcast %cst_27 : f32 to vector<8x32xf32>
    %112 = arith.addf %111, %110 : vector<8x32xf32>
    %113 = arith.divf %111, %112 : vector<8x32xf32>
    %114 = vector.extract_strided_slice %101 {offsets = [0, 64], sizes = [8, 32], strides = [1, 1]} : vector<8x128xf32> to vector<8x32xf32>
    %115 = math.tanh %114 : vector<8x32xf32>
    %116 = vector.extract_strided_slice %101 {offsets = [0, 96], sizes = [8, 32], strides = [1, 1]} : vector<8x128xf32> to vector<8x32xf32>
    %117 = arith.negf %116 : vector<8x32xf32>
    %118 = math.exp %117 : vector<8x32xf32>
    %cst_28 = arith.constant 1.000000e+00 : f32
    %119 = vector.broadcast %cst_28 : f32 to vector<8x32xf32>
    %120 = arith.addf %119, %118 : vector<8x32xf32>
    %121 = arith.divf %119, %120 : vector<8x32xf32>
    %122 = arith.mulf %113, %96 : vector<8x32xf32>
    %123 = arith.mulf %107, %115 : vector<8x32xf32>
    %124 = arith.addf %122, %123 : vector<8x32xf32>
    %125 = math.tanh %124 : vector<8x32xf32>
    %126 = arith.mulf %121, %125 : vector<8x32xf32>
    %127 = vector.extract_strided_slice %11 {offsets = [32, 0], sizes = [8, 128], strides = [1, 1]} : vector<64x128xf32> to vector<8x128xf32>
    %cst_29 = arith.constant dense<0.000000e+00> : vector<8x128xf32>
    %128 = tpu.matmul %126, %12, %cst_29 {dimension_numbers = #tpu.dot_dimension_numbers<[1], [0], [0], [1], [0, 0, 1, 1], [], []>} : vector<8x32xf32>, vector<32x128xf32>, vector<8x128xf32> -> vector<8x128xf32>
    %129 = arith.addf %127, %128 : vector<8x128xf32>
    %130 = vector.extract_strided_slice %129 {offsets = [0, 0], sizes = [8, 32], strides = [1, 1]} : vector<8x128xf32> to vector<8x32xf32>
    %131 = arith.negf %130 : vector<8x32xf32>
    %132 = math.exp %131 : vector<8x32xf32>
    %cst_30 = arith.constant 1.000000e+00 : f32
    %133 = vector.broadcast %cst_30 : f32 to vector<8x32xf32>
    %134 = arith.addf %133, %132 : vector<8x32xf32>
    %135 = arith.divf %133, %134 : vector<8x32xf32>
    %136 = vector.extract_strided_slice %129 {offsets = [0, 32], sizes = [8, 32], strides = [1, 1]} : vector<8x128xf32> to vector<8x32xf32>
    %137 = arith.negf %136 : vector<8x32xf32>
    %138 = math.exp %137 : vector<8x32xf32>
    %cst_31 = arith.constant 1.000000e+00 : f32
    %139 = vector.broadcast %cst_31 : f32 to vector<8x32xf32>
    %140 = arith.addf %139, %138 : vector<8x32xf32>
    %141 = arith.divf %139, %140 : vector<8x32xf32>
    %142 = vector.extract_strided_slice %129 {offsets = [0, 64], sizes = [8, 32], strides = [1, 1]} : vector<8x128xf32> to vector<8x32xf32>
    %143 = math.tanh %142 : vector<8x32xf32>
    %144 = vector.extract_strided_slice %129 {offsets = [0, 96], sizes = [8, 32], strides = [1, 1]} : vector<8x128xf32> to vector<8x32xf32>
    %145 = arith.negf %144 : vector<8x32xf32>
    %146 = math.exp %145 : vector<8x32xf32>
    %cst_32 = arith.constant 1.000000e+00 : f32
    %147 = vector.broadcast %cst_32 : f32 to vector<8x32xf32>
    %148 = arith.addf %147, %146 : vector<8x32xf32>
    %149 = arith.divf %147, %148 : vector<8x32xf32>
    %150 = arith.mulf %141, %124 : vector<8x32xf32>
    %151 = arith.mulf %135, %143 : vector<8x32xf32>
    %152 = arith.addf %150, %151 : vector<8x32xf32>
    %153 = math.tanh %152 : vector<8x32xf32>
    %154 = arith.mulf %149, %153 : vector<8x32xf32>
    %155 = vector.extract_strided_slice %11 {offsets = [40, 0], sizes = [8, 128], strides = [1, 1]} : vector<64x128xf32> to vector<8x128xf32>
    %cst_33 = arith.constant dense<0.000000e+00> : vector<8x128xf32>
    %156 = tpu.matmul %154, %12, %cst_33 {dimension_numbers = #tpu.dot_dimension_numbers<[1], [0], [0], [1], [0, 0, 1, 1], [], []>} : vector<8x32xf32>, vector<32x128xf32>, vector<8x128xf32> -> vector<8x128xf32>
    %157 = arith.addf %155, %156 : vector<8x128xf32>
    %158 = vector.extract_strided_slice %157 {offsets = [0, 0], sizes = [8, 32], strides = [1, 1]} : vector<8x128xf32> to vector<8x32xf32>
    %159 = arith.negf %158 : vector<8x32xf32>
    %160 = math.exp %159 : vector<8x32xf32>
    %cst_34 = arith.constant 1.000000e+00 : f32
    %161 = vector.broadcast %cst_34 : f32 to vector<8x32xf32>
    %162 = arith.addf %161, %160 : vector<8x32xf32>
    %163 = arith.divf %161, %162 : vector<8x32xf32>
    %164 = vector.extract_strided_slice %157 {offsets = [0, 32], sizes = [8, 32], strides = [1, 1]} : vector<8x128xf32> to vector<8x32xf32>
    %165 = arith.negf %164 : vector<8x32xf32>
    %166 = math.exp %165 : vector<8x32xf32>
    %cst_35 = arith.constant 1.000000e+00 : f32
    %167 = vector.broadcast %cst_35 : f32 to vector<8x32xf32>
    %168 = arith.addf %167, %166 : vector<8x32xf32>
    %169 = arith.divf %167, %168 : vector<8x32xf32>
    %170 = vector.extract_strided_slice %157 {offsets = [0, 64], sizes = [8, 32], strides = [1, 1]} : vector<8x128xf32> to vector<8x32xf32>
    %171 = math.tanh %170 : vector<8x32xf32>
    %172 = vector.extract_strided_slice %157 {offsets = [0, 96], sizes = [8, 32], strides = [1, 1]} : vector<8x128xf32> to vector<8x32xf32>
    %173 = arith.negf %172 : vector<8x32xf32>
    %174 = math.exp %173 : vector<8x32xf32>
    %cst_36 = arith.constant 1.000000e+00 : f32
    %175 = vector.broadcast %cst_36 : f32 to vector<8x32xf32>
    %176 = arith.addf %175, %174 : vector<8x32xf32>
    %177 = arith.divf %175, %176 : vector<8x32xf32>
    %178 = arith.mulf %169, %152 : vector<8x32xf32>
    %179 = arith.mulf %163, %171 : vector<8x32xf32>
    %180 = arith.addf %178, %179 : vector<8x32xf32>
    %181 = math.tanh %180 : vector<8x32xf32>
    %182 = arith.mulf %177, %181 : vector<8x32xf32>
    %183 = vector.extract_strided_slice %11 {offsets = [48, 0], sizes = [8, 128], strides = [1, 1]} : vector<64x128xf32> to vector<8x128xf32>
    %cst_37 = arith.constant dense<0.000000e+00> : vector<8x128xf32>
    %184 = tpu.matmul %182, %12, %cst_37 {dimension_numbers = #tpu.dot_dimension_numbers<[1], [0], [0], [1], [0, 0, 1, 1], [], []>} : vector<8x32xf32>, vector<32x128xf32>, vector<8x128xf32> -> vector<8x128xf32>
    %185 = arith.addf %183, %184 : vector<8x128xf32>
    %186 = vector.extract_strided_slice %185 {offsets = [0, 0], sizes = [8, 32], strides = [1, 1]} : vector<8x128xf32> to vector<8x32xf32>
    %187 = arith.negf %186 : vector<8x32xf32>
    %188 = math.exp %187 : vector<8x32xf32>
    %cst_38 = arith.constant 1.000000e+00 : f32
    %189 = vector.broadcast %cst_38 : f32 to vector<8x32xf32>
    %190 = arith.addf %189, %188 : vector<8x32xf32>
    %191 = arith.divf %189, %190 : vector<8x32xf32>
    %192 = vector.extract_strided_slice %185 {offsets = [0, 32], sizes = [8, 32], strides = [1, 1]} : vector<8x128xf32> to vector<8x32xf32>
    %193 = arith.negf %192 : vector<8x32xf32>
    %194 = math.exp %193 : vector<8x32xf32>
    %cst_39 = arith.constant 1.000000e+00 : f32
    %195 = vector.broadcast %cst_39 : f32 to vector<8x32xf32>
    %196 = arith.addf %195, %194 : vector<8x32xf32>
    %197 = arith.divf %195, %196 : vector<8x32xf32>
    %198 = vector.extract_strided_slice %185 {offsets = [0, 64], sizes = [8, 32], strides = [1, 1]} : vector<8x128xf32> to vector<8x32xf32>
    %199 = math.tanh %198 : vector<8x32xf32>
    %200 = vector.extract_strided_slice %185 {offsets = [0, 96], sizes = [8, 32], strides = [1, 1]} : vector<8x128xf32> to vector<8x32xf32>
    %201 = arith.negf %200 : vector<8x32xf32>
    %202 = math.exp %201 : vector<8x32xf32>
    %cst_40 = arith.constant 1.000000e+00 : f32
    %203 = vector.broadcast %cst_40 : f32 to vector<8x32xf32>
    %204 = arith.addf %203, %202 : vector<8x32xf32>
    %205 = arith.divf %203, %204 : vector<8x32xf32>
    %206 = arith.mulf %197, %180 : vector<8x32xf32>
    %207 = arith.mulf %191, %199 : vector<8x32xf32>
    %208 = arith.addf %206, %207 : vector<8x32xf32>
    %209 = math.tanh %208 : vector<8x32xf32>
    %210 = arith.mulf %205, %209 : vector<8x32xf32>
    %211 = vector.extract_strided_slice %11 {offsets = [56, 0], sizes = [8, 128], strides = [1, 1]} : vector<64x128xf32> to vector<8x128xf32>
    %cst_41 = arith.constant dense<0.000000e+00> : vector<8x128xf32>
    %212 = tpu.matmul %210, %12, %cst_41 {dimension_numbers = #tpu.dot_dimension_numbers<[1], [0], [0], [1], [0, 0, 1, 1], [], []>} : vector<8x32xf32>, vector<32x128xf32>, vector<8x128xf32> -> vector<8x128xf32>
    %213 = arith.addf %211, %212 : vector<8x128xf32>
    %214 = vector.extract_strided_slice %213 {offsets = [0, 0], sizes = [8, 32], strides = [1, 1]} : vector<8x128xf32> to vector<8x32xf32>
    %215 = arith.negf %214 : vector<8x32xf32>
    %216 = math.exp %215 : vector<8x32xf32>
    %cst_42 = arith.constant 1.000000e+00 : f32
    %217 = vector.broadcast %cst_42 : f32 to vector<8x32xf32>
    %218 = arith.addf %217, %216 : vector<8x32xf32>
    %219 = arith.divf %217, %218 : vector<8x32xf32>
    %220 = vector.extract_strided_slice %213 {offsets = [0, 32], sizes = [8, 32], strides = [1, 1]} : vector<8x128xf32> to vector<8x32xf32>
    %221 = arith.negf %220 : vector<8x32xf32>
    %222 = math.exp %221 : vector<8x32xf32>
    %cst_43 = arith.constant 1.000000e+00 : f32
    %223 = vector.broadcast %cst_43 : f32 to vector<8x32xf32>
    %224 = arith.addf %223, %222 : vector<8x32xf32>
    %225 = arith.divf %223, %224 : vector<8x32xf32>
    %226 = vector.extract_strided_slice %213 {offsets = [0, 64], sizes = [8, 32], strides = [1, 1]} : vector<8x128xf32> to vector<8x32xf32>
    %227 = math.tanh %226 : vector<8x32xf32>
    %228 = arith.mulf %225, %208 : vector<8x32xf32>
    %229 = arith.mulf %219, %227 : vector<8x32xf32>
    %230 = arith.addf %228, %229 : vector<8x32xf32>
    %c0_44 = arith.constant 0 : index
    %c0_45 = arith.constant 0 : index
    %231 = vector.load %arg7[%c0_44, %c0_45] : memref<8x32xf32, #tpu.memory_space<vmem>>, vector<8x32xf32>
    tpu.vector_store %arg7[%c0_44, %c0_45], %230 {strides = array<i32>} : memref<8x32xf32, #tpu.memory_space<vmem>>, vector<8x32xf32>,
    return
  }
  func.func @transform_0(%arg0: i32) -> (i32, i32) {
    %c0_i32 = arith.constant 0 : i32
    %c0_i32_0 = arith.constant 0 : i32
    %c0_i32_1 = arith.constant 0 : i32
    return %c0_i32, %c0_i32_0 : i32, i32
  }
  func.func @transform_1(%arg0: i32) -> (i32, i32) {
    %c0_i32 = arith.constant 0 : i32
    %c0_i32_0 = arith.constant 0 : i32
    %c0_i32_1 = arith.constant 0 : i32
    return %c0_i32, %c0_i32_0 : i32, i32
  }
  func.func @transform_2(%arg0: i32) -> (i32, i32) {
    %c0_i32 = arith.constant 0 : i32
    %c0_i32_0 = arith.constant 0 : i32
    %c0_i32_1 = arith.constant 0 : i32
    return %c0_i32, %c0_i32_0 : i32, i32
  }
  func.func @transform_3(%arg0: i32) -> (i32, i32) {
    %c0_i32 = arith.constant 0 : i32
    %c0_i32_0 = arith.constant 0 : i32
    %c0_i32_1 = arith.constant 0 : i32
    return %c0_i32, %c0_i32_0 : i32, i32
  }
  func.func @transform_4(%arg0: i32) -> (i32, i32) {
    %c0_i32 = arith.constant 0 : i32
    %c0_i32_0 = arith.constant 0 : i32
    %c0_i32_1 = arith.constant 0 : i32
    return %c0_i32, %c0_i32_0 : i32, i32
  }
  func.func @transform_5(%arg0: i32) -> (i32, i32) {
    %c0_i32 = arith.constant 0 : i32
    %c0_i32_0 = arith.constant 0 : i32
    %c0_i32_1 = arith.constant 0 : i32
    return %c0_i32, %c0_i32_0 : i32, i32
  }
  func.func @transform_6(%arg0: i32) -> (i32, i32) {
    %c0_i32 = arith.constant 0 : i32
    %c0_i32_0 = arith.constant 0 : i32
    %c0_i32_1 = arith.constant 0 : i32
    return %c0_i32, %c0_i32_0 : i32, i32
  }
}

</mosaic_0001>

<llo_original>
// kernel: tpu_custom_call.1
$region0: #{tpu_custom_call.1}
  #allocation0 [shape = 'u32[]', space=smem, size = 0x4, offset = 0x4, fixed_abs, tag = 'smem constant byte address 0x4 - core index']
  #allocation1 [shape = 'u32[144,128]{1,0:T(1,128)}', space=vmem, size = 0x12000, scoped, tag = 'internal scratch']
  %s0 = inlined_call_operand.vmem [shape: f32[64,4], index: 0, kind: input, shape index: {}]
  %s1 = inlined_call_operand.vmem [shape: f32[64,1], index: 1, kind: input, shape index: {}]
  %s2 = inlined_call_operand.vmem [shape: f32[4,128], index: 2, kind: input, shape index: {}]
  %s3 = inlined_call_operand.vmem [shape: f32[1,128], index: 3, kind: input, shape index: {}]
  %s4 = inlined_call_operand.vmem [shape: f32[32,128], index: 4, kind: input, shape index: {}]
  %s5 = inlined_call_operand.vmem [shape: f32[1,128], index: 5, kind: input, shape index: {}]
  %s6 = inlined_call_operand.hbm [shape: f32[8,32], index: 6, kind: output, shape index: {}]
  %s7 = sld [smem:[#allocation0]]
  $region34: #{tpu_custom_call.1} parent=0
    _
  %s9 = ssub.s32 1, %s7
  %s10 = scalar_select 0, %s9, %s7
  $region1: #{tpu_custom_call.1} parent=0
    #allocation2 [shape = 'u8[4096]{0}', space=vmem, size = 0x1000, scoped, tag = 'output window, operand 0, single buffered']
    #allocation3 [shape = 's32[1]{0}', space=sflag, size = 0x4, scoped, tag = 'scoped memory for tpu_custom_call.1']
    %11 = vsyncpa [#allocation3], 0
    // Predicated region
    $region2: #{tpu_custom_call.1} parent=1 // pred_check
      _
    $region3: #{tpu_custom_call.1} parent=1 // pred_check_branch
      %13 = sbr.rel (0) target = $region5
    $region4: #{tpu_custom_call.1} parent=1 // pred_region
      _
    $region5: #{tpu_custom_call.1} parent=1 // pred_fallthru
      _
    // Predicated region
    $region6: #{tpu_custom_call.1} parent=1 // pred_check
      _
    $region7: #{tpu_custom_call.1} parent=1 // pred_check_branch
      %15 = sbr.rel (0) target = $region9
    $region8: #{tpu_custom_call.1} parent=1 // pred_region
      _
    $region9: #{tpu_custom_call.1} parent=1 // pred_fallthru
      _
    // Predicated region
    $region10: #{tpu_custom_call.1} parent=1 // pred_check
      _
    $region11: #{tpu_custom_call.1} parent=1 // pred_check_branch
      %17 = sbr.rel (0) target = $region13
    $region12: #{tpu_custom_call.1} parent=1 // pred_region
      _
    $region13: #{tpu_custom_call.1} parent=1 // pred_fallthru
      _
    // Predicated region
    $region14: #{tpu_custom_call.1} parent=1 // pred_check
      _
    $region15: #{tpu_custom_call.1} parent=1 // pred_check_branch
      %19 = sbr.rel (0) target = $region17
    $region16: #{tpu_custom_call.1} parent=1 // pred_region
      _
    $region17: #{tpu_custom_call.1} parent=1 // pred_fallthru
      _
    // Predicated region
    $region18: #{tpu_custom_call.1} parent=1 // pred_check
      _
    $region19: #{tpu_custom_call.1} parent=1 // pred_check_branch
      %21 = sbr.rel (0) target = $region21
    $region20: #{tpu_custom_call.1} parent=1 // pred_region
      _
    $region21: #{tpu_custom_call.1} parent=1 // pred_fallthru
      _
    // Predicated region
    $region22: #{tpu_custom_call.1} parent=1 // pred_check
      _
    $region23: #{tpu_custom_call.1} parent=1 // pred_check_branch
      %23 = sbr.rel (0) target = $region25
    $region24: #{tpu_custom_call.1} parent=1 // pred_region
      _
    $region25: #{tpu_custom_call.1} parent=1 // pred_fallthru
      _
    %v24 = vld [vmem:[%s0] sm:$0xff]
    %v25 = vld [vmem:[%s0 + $0x8] sm:$0xff]
    %v26 = vld [vmem:[%s0 + $0x10] sm:$0xff]
    %v27 = vld [vmem:[%s0 + $0x18] sm:$0xff]
    %v28 = vld [vmem:[%s0 + $0x20] sm:$0xff]
    %v29 = vld [vmem:[%s0 + $0x28] sm:$0xff]
    %v30 = vld [vmem:[%s0 + $0x30] sm:$0xff]
    %v31 = vld [vmem:[%s0 + $0x38] sm:$0xff]
    %v32 = vld [vmem:[%s2] sm:$0xf]
    %v33 = vld [vmem:[%s1] sm:$0xff]
    %v34 = vld [vmem:[%s1 + $0x8] sm:$0xff]
    %v35 = vld [vmem:[%s1 + $0x10] sm:$0xff]
    %v36 = vld [vmem:[%s1 + $0x18] sm:$0xff]
    %v37 = vld [vmem:[%s1 + $0x20] sm:$0xff]
    %v38 = vld [vmem:[%s1 + $0x28] sm:$0xff]
    %v39 = vld [vmem:[%s1 + $0x30] sm:$0xff]
    %v40 = vld [vmem:[%s1 + $0x38] sm:$0xff]
    %v41 = vld [vmem:[%s3] sm:$0x1]
    %43 = vset.pattern.permute.xlu0 0
    %44 = vperm.xlu0 %43, %v33
    %v45 = vpop.permute.xlu0 %44
    %48 = vset.pattern.permute.xlu0 0
    %49 = vperm.xlu0 %48, %v34
    %v50 = vpop.permute.xlu0 %49
    %53 = vset.pattern.permute.xlu0 0
    %54 = vperm.xlu0 %53, %v35
    %v55 = vpop.permute.xlu0 %54
    %58 = vset.pattern.permute.xlu0 0
    %59 = vperm.xlu0 %58, %v36
    %v60 = vpop.permute.xlu0 %59
    %63 = vset.pattern.permute.xlu0 0
    %64 = vperm.xlu0 %63, %v37
    %v65 = vpop.permute.xlu0 %64
    %68 = vset.pattern.permute.xlu0 0
    %69 = vperm.xlu0 %68, %v38
    %v70 = vpop.permute.xlu0 %69
    %73 = vset.pattern.permute.xlu0 0
    %74 = vperm.xlu0 %73, %v39
    %v75 = vpop.permute.xlu0 %74
    %78 = vset.pattern.permute.xlu0 0
    %79 = vperm.xlu0 %78, %v40
    %v80 = vpop.permute.xlu0 %79
    %v83 = vlaneseq
    %v84 = vshrl.u32 %v83, 7
    %v85 = vsub.s32 0, %v84
    %v86 = vrot.slane %v41, %v85
    %v88 = vmul.f32 %v45, %v86
    %v89 = vmul.f32 %v50, %v86
    %v90 = vmul.f32 %v55, %v86
    %v91 = vmul.f32 %v60, %v86
    %v92 = vmul.f32 %v65, %v86
    %v93 = vmul.f32 %v70, %v86
    %v94 = vmul.f32 %v75, %v86
    %v95 = vmul.f32 %v80, %v86
    %vm96 = vcmask 31744
    %v98 = vsel %vm96, %v24, 0
    %v101 = vsel %vm96, %v25, 0
    %v104 = vsel %vm96, %v26, 0
    %v107 = vsel %vm96, %v27, 0
    %v110 = vsel %vm96, %v28, 0
    %v113 = vsel %vm96, %v29, 0
    %v116 = vsel %vm96, %v30, 0
    %v119 = vsel %vm96, %v31, 0
    %vm121 = vcmask 1043456
    %v123 = vsel %vm121, %v32, 0
    %125 = vmatprep.subr.mxu0 0.0
    %126 = vmatpush1.msra.mxu0 %v123
    %127 = vmatprep.subr.mxu0 0.0
    %128 = vmatpush1.msra.mxu0 0.0
    %129 = vmatprep.subr.mxu0 0.0
    %130 = vmatpush1.msra.mxu0 0.0
    %131 = vmatprep.subr.mxu0 0.0
    %132 = vmatpush1.msra.mxu0 0.0
    %133 = vmatprep.subr.mxu0 0.0
    %134 = vmatpush1.msra.mxu0 0.0
    %135 = vmatprep.subr.mxu0 0.0
    %136 = vmatpush1.msra.mxu0 0.0
    %137 = vmatprep.subr.mxu0 0.0
    %138 = vmatpush1.msra.mxu0 0.0
    %139 = vmatprep.subr.mxu0 0.0
    %140 = vmatpush1.msra.mxu0 0.0
    %141 = vmatprep.subr.mxu0 0.0
    %142 = vmatpush1.msra.mxu0 0.0
    %143 = vmatprep.subr.mxu0 0.0
    %144 = vmatpush1.msra.mxu0 0.0
    %145 = vmatprep.subr.mxu0 0.0
    %146 = vmatpush1.msra.mxu0 0.0
    %147 = vmatprep.subr.mxu0 0.0
    %148 = vmatpush1.msra.mxu0 0.0
    %149 = vmatprep.subr.mxu0 0.0
    %150 = vmatpush1.msra.mxu0 0.0
    %151 = vmatprep.subr.mxu0 0.0
    %152 = vmatpush1.msra.mxu0 0.0
    %153 = vmatprep.subr.mxu0 0.0
    %154 = vmatpush1.msra.mxu0 0.0
    %155 = vmatprep.subr.mxu0 0.0
    %156 = vmatpush1.msra.mxu0 0.0
    %157 = vmatprep.subr.mxu0 0.0
    %158 = vmatpush1.msra.mxu0 0.0
    %159 = vmatprep.subr.mxu0 0.0
    %160 = vmatpush1.msra.mxu0 0.0
    %161 = vmatprep.subr.mxu0 0.0
    %162 = vmatpush1.msra.mxu0 0.0
    %163 = vmatprep.subr.mxu0 0.0
    %164 = vmatpush1.msra.mxu0 0.0
    %165 = vmatprep.subr.mxu0 0.0
    %166 = vmatpush1.msra.mxu0 0.0
    %167 = vmatprep.subr.mxu0 0.0
    %168 = vmatpush1.msra.mxu0 0.0
    %169 = vmatprep.subr.mxu0 0.0
    %170 = vmatpush1.msra.mxu0 0.0
    %171 = vmatprep.subr.mxu0 0.0
    %172 = vmatpush1.msra.mxu0 0.0
    %173 = vmatprep.subr.mxu0 0.0
    %174 = vmatpush1.msra.mxu0 0.0
    %175 = vmatprep.subr.mxu0 0.0
    %176 = vmatpush1.msra.mxu0 0.0
    %177 = vmatprep.subr.mxu0 0.0
    %178 = vmatpush1.msra.mxu0 0.0
    %179 = vmatprep.subr.mxu0 0.0
    %180 = vmatpush1.msra.mxu0 0.0
    %181 = vmatprep.subr.mxu0 0.0
    %182 = vmatpush1.msra.mxu0 0.0
    %183 = vmatprep.subr.mxu0 0.0
    %184 = vmatpush1.msra.mxu0 0.0
    %185 = vmatprep.subr.mxu0 0.0
    %186 = vmatpush1.msra.mxu0 0.0
    %187 = vmatprep.subr.mxu0 0.0
    %188 = vmatpush1.msra.mxu0 0.0
    %189 = vmatprep.mubr.f32.mxu0 0.0
    %190 = vmatmul.mubr.f32.gmra.mrb[0].mxu0 %v98
    %v191 = vpop.f32.mrb[0].mxu0
    %v192 = vadd.f32 %v88, %v191
    %v193 = vpop.f32.mrb[0].mxu0
    %194 = vmatprep.mubr.f32.mxu0 0.0
    %195 = vmatmul.mubr.f32.gmra.mrb[0].mxu0 %v101
    %v196 = vpop.f32.mrb[0].mxu0
    %v197 = vadd.f32 %v89, %v196
    %v198 = vpop.f32.mrb[0].mxu0
    %199 = vmatprep.mubr.f32.mxu0 0.0
    %200 = vmatmul.mubr.f32.gmra.mrb[0].mxu0 %v104
    %v201 = vpop.f32.mrb[0].mxu0
    %v202 = vadd.f32 %v90, %v201
    %v203 = vpop.f32.mrb[0].mxu0
    %204 = vmatprep.mubr.f32.mxu0 0.0
    %205 = vmatmul.mubr.f32.gmra.mrb[0].mxu0 %v107
    %v206 = vpop.f32.mrb[0].mxu0
    %v207 = vadd.f32 %v91, %v206
    %v208 = vpop.f32.mrb[0].mxu0
    %209 = vmatprep.mubr.f32.mxu0 0.0
    %210 = vmatmul.mubr.f32.gmra.mrb[0].mxu0 %v110
    %v211 = vpop.f32.mrb[0].mxu0
    %v212 = vadd.f32 %v92, %v211
    %v213 = vpop.f32.mrb[0].mxu0
    %214 = vmatprep.mubr.f32.mxu0 0.0
    %215 = vmatmul.mubr.f32.gmra.mrb[0].mxu0 %v113
    %v216 = vpop.f32.mrb[0].mxu0
    %v217 = vadd.f32 %v93, %v216
    %v218 = vpop.f32.mrb[0].mxu0
    %219 = vmatprep.mubr.f32.mxu0 0.0
    %220 = vmatmul.mubr.f32.gmra.mrb[0].mxu0 %v116
    %v221 = vpop.f32.mrb[0].mxu0
    %v222 = vadd.f32 %v94, %v221
    %v223 = vpop.f32.mrb[0].mxu0
    %224 = vmatprep.mubr.f32.mxu0 0.0
    %225 = vmatmul.mubr.f32.gmra.mrb[0].mxu0 %v119
    %v226 = vpop.f32.mrb[0].mxu0
    %v227 = vadd.f32 %v95, %v226
    %v228 = vpop.f32.mrb[0].mxu0
    %229 = vdwg.mxu0
    %v230 = vld [vmem:[%s5] sm:$0x1]
    %v232 = vlaneseq
    %v233 = vshrl.u32 %v232, 7
    %v234 = vsub.s32 0, %v233
    %v235 = vrot.slane %v230, %v234
    %v237 = vadd.f32 %v192, %v235
    %v238 = vadd.f32 %v197, %v235
    %v239 = vadd.f32 %v202, %v235
    %v240 = vadd.f32 %v207, %v235
    %v241 = vadd.f32 %v212, %v235
    %v242 = vadd.f32 %v217, %v235
    %v243 = vadd.f32 %v222, %v235
    %v244 = vadd.f32 %v227, %v235
    %v245 = vld [vmem:[%s4] sm:$0xff]
    %v246 = vld [vmem:[%s4 + $0x8] sm:$0xff]
    %v247 = vld [vmem:[%s4 + $0x10] sm:$0xff]
    %v248 = vld [vmem:[%s4 + $0x18] sm:$0xff]
    %vm249 = vcmask 261120
    %v251 = vsel %vm249, 0.0, 0
    %253 = vmatprep.subr.mxu0 0.0
    %254 = vmatpush1.msra.mxu0 %v245
    %255 = vmatprep.subr.mxu0 0.0
    %256 = vmatpush1.msra.mxu0 %v246
    %257 = vmatprep.subr.mxu0 0.0
    %258 = vmatpush1.msra.mxu0 %v247
    %259 = vmatprep.subr.mxu0 0.0
    %260 = vmatpush1.msra.mxu0 %v248
    %261 = vmatprep.subr.mxu0 0.0
    %262 = vmatpush1.msra.mxu0 0.0
    %263 = vmatprep.subr.mxu0 0.0
    %264 = vmatpush1.msra.mxu0 0.0
    %265 = vmatprep.subr.mxu0 0.0
    %266 = vmatpush1.msra.mxu0 0.0
    %267 = vmatprep.subr.mxu0 0.0
    %268 = vmatpush1.msra.mxu0 0.0
    %269 = vmatprep.subr.mxu0 0.0
    %270 = vmatpush1.msra.mxu0 0.0
    %271 = vmatprep.subr.mxu0 0.0
    %272 = vmatpush1.msra.mxu0 0.0
    %273 = vmatprep.subr.mxu0 0.0
    %274 = vmatpush1.msra.mxu0 0.0
    %275 = vmatprep.subr.mxu0 0.0
    %276 = vmatpush1.msra.mxu0 0.0
    %277 = vmatprep.subr.mxu0 0.0
    %278 = vmatpush1.msra.mxu0 0.0
    %279 = vmatprep.subr.mxu0 0.0
    %280 = vmatpush1.msra.mxu0 0.0
    %281 = vmatprep.subr.mxu0 0.0
    %282 = vmatpush1.msra.mxu0 0.0
    %283 = vmatprep.subr.mxu0 0.0
    %284 = vmatpush1.msra.mxu0 0.0
    %285 = vmatprep.subr.mxu0 0.0
    %286 = vmatpush1.msra.mxu0 0.0
    %287 = vmatprep.subr.mxu0 0.0
    %288 = vmatpush1.msra.mxu0 0.0
    %289 = vmatprep.subr.mxu0 0.0
    %290 = vmatpush1.msra.mxu0 0.0
    %291 = vmatprep.subr.mxu0 0.0
    %292 = vmatpush1.msra.mxu0 0.0
    %293 = vmatprep.subr.mxu0 0.0
    %294 = vmatpush1.msra.mxu0 0.0
    %295 = vmatprep.subr.mxu0 0.0
    %296 = vmatpush1.msra.mxu0 0.0
    %297 = vmatprep.subr.mxu0 0.0
    %298 = vmatpush1.msra.mxu0 0.0
    %299 = vmatprep.subr.mxu0 0.0
    %300 = vmatpush1.msra.mxu0 0.0
    %301 = vmatprep.subr.mxu0 0.0
    %302 = vmatpush1.msra.mxu0 0.0
    %303 = vmatprep.subr.mxu0 0.0
    %304 = vmatpush1.msra.mxu0 0.0
    %305 = vmatprep.subr.mxu0 0.0
    %306 = vmatpush1.msra.mxu0 0.0
    %307 = vmatprep.subr.mxu0 0.0
    %308 = vmatpush1.msra.mxu0 0.0
    %309 = vmatprep.subr.mxu0 0.0
    %310 = vmatpush1.msra.mxu0 0.0
    %311 = vmatprep.subr.mxu0 0.0
    %312 = vmatpush1.msra.mxu0 0.0
    %313 = vmatprep.subr.mxu0 0.0
    %314 = vmatpush1.msra.mxu0 0.0
    %315 = vmatprep.subr.mxu0 0.0
    %316 = vmatpush1.msra.mxu0 0.0
    %317 = vmatprep.mubr.f32.mxu0 0.0
    %318 = vmatmul.mubr.f32.gmra.mrb[0].mxu0 %v251
    %v319 = vpop.f32.mrb[0].mxu0
    %v320 = vadd.f32 0.0, %v319
    %v321 = vpop.f32.mrb[0].mxu0
    %322 = vdwg.mxu0
    %v323 = vadd.f32 %v237, %v320
    %v324 = vxor.u32 %v323, 2147483648
    %v325 = vmul.f32 %v324, 1.442695
    %v326 = vpow.pop %v325
    %v327 = vadd.f32 %v326, 1.0
    %v328 = vrcp.pop %v327
    %v329 = vmul.f32 1.0, %v328
    %v330 = vtanh.pop %v323
    %v331 = vmul.f32 %v329, 0.0
    %333 = vrot.lane.b32.xlu0 %v330, 64
    %v334 = vpop.permute.xlu0 %333
    %v336 = vmul.f32 %v329, %v334
    %338 = vrot.lane.b32.xlu0 %v336, 32
    %v339 = vpop.permute.xlu0 %338
    %v341 = vadd.f32 %v331, %v339
    %v342 = vtanh.pop %v341
    %344 = vrot.lane.b32.xlu0 %v342, 64
    %v345 = vpop.permute.xlu0 %344
    %v347 = vmul.f32 %v329, %v345
    %349 = vrot.lane.b32.xlu0 %v347, 32
    %v350 = vpop.permute.xlu0 %349
    %v351 = vsel %vm249, %v350, 0
    %353 = vmatprep.subr.mxu0 0.0
    %354 = vmatpush1.msra.mxu0 %v245
    %355 = vmatprep.subr.mxu0 0.0
    %356 = vmatpush1.msra.mxu0 %v246
    %357 = vmatprep.subr.mxu0 0.0
    %358 = vmatpush1.msra.mxu0 %v247
    %359 = vmatprep.subr.mxu0 0.0
    %360 = vmatpush1.msra.mxu0 %v248
    %361 = vmatprep.subr.mxu0 0.0
    %362 = vmatpush1.msra.mxu0 0.0
    %363 = vmatprep.subr.mxu0 0.0
    %364 = vmatpush1.msra.mxu0 0.0
    %365 = vmatprep.subr.mxu0 0.0
    %366 = vmatpush1.msra.mxu0 0.0
    %367 = vmatprep.subr.mxu0 0.0
    %368 = vmatpush1.msra.mxu0 0.0
    %369 = vmatprep.subr.mxu0 0.0
    %370 = vmatpush1.msra.mxu0 0.0
    %371 = vmatprep.subr.mxu0 0.0
    %372 = vmatpush1.msra.mxu0 0.0
    %373 = vmatprep.subr.mxu0 0.0
    %374 = vmatpush1.msra.mxu0 0.0
    %375 = vmatprep.subr.mxu0 0.0
    %376 = vmatpush1.msra.mxu0 0.0
    %377 = vmatprep.subr.mxu0 0.0
    %378 = vmatpush1.msra.mxu0 0.0
    %379 = vmatprep.subr.mxu0 0.0
    %380 = vmatpush1.msra.mxu0 0.0
    %381 = vmatprep.subr.mxu0 0.0
    %382 = vmatpush1.msra.mxu0 0.0
    %383 = vmatprep.subr.mxu0 0.0
    %384 = vmatpush1.msra.mxu0 0.0
    %385 = vmatprep.subr.mxu0 0.0
    %386 = vmatpush1.msra.mxu0 0.0
    %387 = vmatprep.subr.mxu0 0.0
    %388 = vmatpush1.msra.mxu0 0.0
    %389 = vmatprep.subr.mxu0 0.0
    %390 = vmatpush1.msra.mxu0 0.0
    %391 = vmatprep.subr.mxu0 0.0
    %392 = vmatpush1.msra.mxu0 0.0
    %393 = vmatprep.subr.mxu0 0.0
    %394 = vmatpush1.msra.mxu0 0.0
    %395 = vmatprep.subr.mxu0 0.0
    %396 = vmatpush1.msra.mxu0 0.0
    %397 = vmatprep.subr.mxu0 0.0
    %398 = vmatpush1.msra.mxu0 0.0
    %399 = vmatprep.subr.mxu0 0.0
    %400 = vmatpush1.msra.mxu0 0.0
    %401 = vmatprep.subr.mxu0 0.0
    %402 = vmatpush1.msra.mxu0 0.0
    %403 = vmatprep.subr.mxu0 0.0
    %404 = vmatpush1.msra.mxu0 0.0
    %405 = vmatprep.subr.mxu0 0.0
    %406 = vmatpush1.msra.mxu0 0.0
    %407 = vmatprep.subr.mxu0 0.0
    %408 = vmatpush1.msra.mxu0 0.0
    %409 = vmatprep.subr.mxu0 0.0
    %410 = vmatpush1.msra.mxu0 0.0
    %411 = vmatprep.subr.mxu0 0.0
    %412 = vmatpush1.msra.mxu0 0.0
    %413 = vmatprep.subr.mxu0 0.0
    %414 = vmatpush1.msra.mxu0 0.0
    %415 = vmatprep.subr.mxu0 0.0
    %416 = vmatpush1.msra.mxu0 0.0
    %417 = vmatprep.mubr.f32.mxu0 0.0
    %418 = vmatmul.mubr.f32.gmra.mrb[0].mxu0 %v351
    %v419 = vpop.f32.mrb[0].mxu0
    %v420 = vadd.f32 0.0, %v419
    %v421 = vpop.f32.mrb[0].mxu0
    %422 = vdwg.mxu0
    %v423 = vadd.f32 %v238, %v420
    %v424 = vxor.u32 %v423, 2147483648
    %v425 = vmul.f32 %v424, 1.442695
    %v426 = vpow.pop %v425
    %v427 = vadd.f32 %v426, 1.0
    %v428 = vrcp.pop %v427
    %v429 = vmul.f32 1.0, %v428
    %v430 = vtanh.pop %v423
    %v431 = vmul.f32 %v429, %v341
    %433 = vrot.lane.b32.xlu0 %v430, 64
    %v434 = vpop.permute.xlu0 %433
    %v436 = vmul.f32 %v429, %v434
    %438 = vrot.lane.b32.xlu0 %v436, 32
    %v439 = vpop.permute.xlu0 %438
    %v441 = vadd.f32 %v431, %v439
    %v442 = vtanh.pop %v441
    %444 = vrot.lane.b32.xlu0 %v442, 64
    %v445 = vpop.permute.xlu0 %444
    %v447 = vmul.f32 %v429, %v445
    %449 = vrot.lane.b32.xlu0 %v447, 32
    %v450 = vpop.permute.xlu0 %449
    %v451 = vsel %vm249, %v450, 0
    %453 = vmatprep.subr.mxu0 0.0
    %454 = vmatpush1.msra.mxu0 %v245
    %455 = vmatprep.subr.mxu0 0.0
    %456 = vmatpush1.msra.mxu0 %v246
    %457 = vmatprep.subr.mxu0 0.0
    %458 = vmatpush1.msra.mxu0 %v247
    %459 = vmatprep.subr.mxu0 0.0
    %460 = vmatpush1.msra.mxu0 %v248
    %461 = vmatprep.subr.mxu0 0.0
    %462 = vmatpush1.msra.mxu0 0.0
    %463 = vmatprep.subr.mxu0 0.0
    %464 = vmatpush1.msra.mxu0 0.0
    %465 = vmatprep.subr.mxu0 0.0
    %466 = vmatpush1.msra.mxu0 0.0
    %467 = vmatprep.subr.mxu0 0.0
    %468 = vmatpush1.msra.mxu0 0.0
    %469 = vmatprep.subr.mxu0 0.0
    %470 = vmatpush1.msra.mxu0 0.0
    %471 = vmatprep.subr.mxu0 0.0
    %472 = vmatpush1.msra.mxu0 0.0
    %473 = vmatprep.subr.mxu0 0.0
    %474 = vmatpush1.msra.mxu0 0.0
    %475 = vmatprep.subr.mxu0 0.0
    %476 = vmatpush1.msra.mxu0 0.0
    %477 = vmatprep.subr.mxu0 0.0
    %478 = vmatpush1.msra.mxu0 0.0
    %479 = vmatprep.subr.mxu0 0.0
    %480 = vmatpush1.msra.mxu0 0.0
    %481 = vmatprep.subr.mxu0 0.0
    %482 = vmatpush1.msra.mxu0 0.0
    %483 = vmatprep.subr.mxu0 0.0
    %484 = vmatpush1.msra.mxu0 0.0
    %485 = vmatprep.subr.mxu0 0.0
    %486 = vmatpush1.msra.mxu0 0.0
    %487 = vmatprep.subr.mxu0 0.0
    %488 = vmatpush1.msra.mxu0 0.0
    %489 = vmatprep.subr.mxu0 0.0
    %490 = vmatpush1.msra.mxu0 0.0
    %491 = vmatprep.subr.mxu0 0.0
    %492 = vmatpush1.msra.mxu0 0.0
    %493 = vmatprep.subr.mxu0 0.0
    %494 = vmatpush1.msra.mxu0 0.0
    %495 = vmatprep.subr.mxu0 0.0
    %496 = vmatpush1.msra.mxu0 0.0
    %497 = vmatprep.subr.mxu0 0.0
    %498 = vmatpush1.msra.mxu0 0.0
    %499 = vmatprep.subr.mxu0 0.0
    %500 = vmatpush1.msra.mxu0 0.0
    %501 = vmatprep.subr.mxu0 0.0
    %502 = vmatpush1.msra.mxu0 0.0
    %503 = vmatprep.subr.mxu0 0.0
    %504 = vmatpush1.msra.mxu0 0.0
    %505 = vmatprep.subr.mxu0 0.0
    %506 = vmatpush1.msra.mxu0 0.0
    %507 = vmatprep.subr.mxu0 0.0
    %508 = vmatpush1.msra.mxu0 0.0
    %509 = vmatprep.subr.mxu0 0.0
    %510 = vmatpush1.msra.mxu0 0.0
    %511 = vmatprep.subr.mxu0 0.0
    %512 = vmatpush1.msra.mxu0 0.0
    %513 = vmatprep.subr.mxu0 0.0
    %514 = vmatpush1.msra.mxu0 0.0
    %515 = vmatprep.subr.mxu0 0.0
    %516 = vmatpush1.msra.mxu0 0.0
    %517 = vmatprep.mubr.f32.mxu0 0.0
    %518 = vmatmul.mubr.f32.gmra.mrb[0].mxu0 %v451
    %v519 = vpop.f32.mrb[0].mxu0
    %v520 = vadd.f32 0.0, %v519
    %v521 = vpop.f32.mrb[0].mxu0
    %522 = vdwg.mxu0
    %v523 = vadd.f32 %v239, %v520
    %v524 = vxor.u32 %v523, 2147483648
    %v525 = vmul.f32 %v524, 1.442695
    %v526 = vpow.pop %v525
    %v527 = vadd.f32 %v526, 1.0
    %v528 = vrcp.pop %v527
    %v529 = vmul.f32 1.0, %v528
    %v530 = vtanh.pop %v523
    %v531 = vmul.f32 %v529, %v441
    %533 = vrot.lane.b32.xlu0 %v530, 64
    %v534 = vpop.permute.xlu0 %533
    %v536 = vmul.f32 %v529, %v534
    %538 = vrot.lane.b32.xlu0 %v536, 32
    %v539 = vpop.permute.xlu0 %538
    %v541 = vadd.f32 %v531, %v539
    %v542 = vtanh.pop %v541
    %544 = vrot.lane.b32.xlu0 %v542, 64
    %v545 = vpop.permute.xlu0 %544
    %v547 = vmul.f32 %v529, %v545
    %549 = vrot.lane.b32.xlu0 %v547, 32
    %v550 = vpop.permute.xlu0 %549
    %v551 = vsel %vm249, %v550, 0
    %553 = vmatprep.subr.mxu0 0.0
    %554 = vmatpush1.msra.mxu0 %v245
    %555 = vmatprep.subr.mxu0 0.0
    %556 = vmatpush1.msra.mxu0 %v246
    %557 = vmatprep.subr.mxu0 0.0
    %558 = vmatpush1.msra.mxu0 %v247
    %559 = vmatprep.subr.mxu0 0.0
    %560 = vmatpush1.msra.mxu0 %v248
    %561 = vmatprep.subr.mxu0 0.0
    %562 = vmatpush1.msra.mxu0 0.0
    %563 = vmatprep.subr.mxu0 0.0
    %564 = vmatpush1.msra.mxu0 0.0
    %565 = vmatprep.subr.mxu0 0.0
    %566 = vmatpush1.msra.mxu0 0.0
    %567 = vmatprep.subr.mxu0 0.0
    %568 = vmatpush1.msra.mxu0 0.0
    %569 = vmatprep.subr.mxu0 0.0
    %570 = vmatpush1.msra.mxu0 0.0
    %571 = vmatprep.subr.mxu0 0.0
    %572 = vmatpush1.msra.mxu0 0.0
    %573 = vmatprep.subr.mxu0 0.0
    %574 = vmatpush1.msra.mxu0 0.0
    %575 = vmatprep.subr.mxu0 0.0
    %576 = vmatpush1.msra.mxu0 0.0
    %577 = vmatprep.subr.mxu0 0.0
    %578 = vmatpush1.msra.mxu0 0.0
    %579 = vmatprep.subr.mxu0 0.0
    %580 = vmatpush1.msra.mxu0 0.0
    %581 = vmatprep.subr.mxu0 0.0
    %582 = vmatpush1.msra.mxu0 0.0
    %583 = vmatprep.subr.mxu0 0.0
    %584 = vmatpush1.msra.mxu0 0.0
    %585 = vmatprep.subr.mxu0 0.0
    %586 = vmatpush1.msra.mxu0 0.0
    %587 = vmatprep.subr.mxu0 0.0
    %588 = vmatpush1.msra.mxu0 0.0
    %589 = vmatprep.subr.mxu0 0.0
    %590 = vmatpush1.msra.mxu0 0.0
    %591 = vmatprep.subr.mxu0 0.0
    %592 = vmatpush1.msra.mxu0 0.0
    %593 = vmatprep.subr.mxu0 0.0
    %594 = vmatpush1.msra.mxu0 0.0
    %595 = vmatprep.subr.mxu0 0.0
    %596 = vmatpush1.msra.mxu0 0.0
    %597 = vmatprep.subr.mxu0 0.0
    %598 = vmatpush1.msra.mxu0 0.0
    %599 = vmatprep.subr.mxu0 0.0
    %600 = vmatpush1.msra.mxu0 0.0
    %601 = vmatprep.subr.mxu0 0.0
    %602 = vmatpush1.msra.mxu0 0.0
    %603 = vmatprep.subr.mxu0 0.0
    %604 = vmatpush1.msra.mxu0 0.0
    %605 = vmatprep.subr.mxu0 0.0
    %606 = vmatpush1.msra.mxu0 0.0
    %607 = vmatprep.subr.mxu0 0.0
    %608 = vmatpush1.msra.mxu0 0.0
    %609 = vmatprep.subr.mxu0 0.0
    %610 = vmatpush1.msra.mxu0 0.0
    %611 = vmatprep.subr.mxu0 0.0
    %612 = vmatpush1.msra.mxu0 0.0
    %613 = vmatprep.subr.mxu0 0.0
    %614 = vmatpush1.msra.mxu0 0.0
    %615 = vmatprep.subr.mxu0 0.0
    %616 = vmatpush1.msra.mxu0 0.0
    %617 = vmatprep.mubr.f32.mxu0 0.0
    %618 = vmatmul.mubr.f32.gmra.mrb[0].mxu0 %v551
    %v619 = vpop.f32.mrb[0].mxu0
    %v620 = vadd.f32 0.0, %v619
    %v621 = vpop.f32.mrb[0].mxu0
    %622 = vdwg.mxu0
    %v623 = vadd.f32 %v240, %v620
    %v624 = vxor.u32 %v623, 2147483648
    %v625 = vmul.f32 %v624, 1.442695
    %v626 = vpow.pop %v625
    %v627 = vadd.f32 %v626, 1.0
    %v628 = vrcp.pop %v627
    %v629 = vmul.f32 1.0, %v628
    %v630 = vtanh.pop %v623
    %v631 = vmul.f32 %v629, %v541
    %633 = vrot.lane.b32.xlu0 %v630, 64
    %v634 = vpop.permute.xlu0 %633
    %v636 = vmul.f32 %v629, %v634
    %638 = vrot.lane.b32.xlu0 %v636, 32
    %v639 = vpop.permute.xlu0 %638
    %v641 = vadd.f32 %v631, %v639
    %v642 = vtanh.pop %v641
    %644 = vrot.lane.b32.xlu0 %v642, 64
    %v645 = vpop.permute.xlu0 %644
    %v647 = vmul.f32 %v629, %v645
    %649 = vrot.lane.b32.xlu0 %v647, 32
    %v650 = vpop.permute.xlu0 %649
    %v651 = vsel %vm249, %v650, 0
    %653 = vmatprep.subr.mxu0 0.0
    %654 = vmatpush1.msra.mxu0 %v245
    %655 = vmatprep.subr.mxu0 0.0
    %656 = vmatpush1.msra.mxu0 %v246
    %657 = vmatprep.subr.mxu0 0.0
    %658 = vmatpush1.msra.mxu0 %v247
    %659 = vmatprep.subr.mxu0 0.0
    %660 = vmatpush1.msra.mxu0 %v248
    %661 = vmatprep.subr.mxu0 0.0
    %662 = vmatpush1.msra.mxu0 0.0
    %663 = vmatprep.subr.mxu0 0.0
    %664 = vmatpush1.msra.mxu0 0.0
    %665 = vmatprep.subr.mxu0 0.0
    %666 = vmatpush1.msra.mxu0 0.0
    %667 = vmatprep.subr.mxu0 0.0
    %668 = vmatpush1.msra.mxu0 0.0
    %669 = vmatprep.subr.mxu0 0.0
    %670 = vmatpush1.msra.mxu0 0.0
    %671 = vmatprep.subr.mxu0 0.0
    %672 = vmatpush1.msra.mxu0 0.0
    %673 = vmatprep.subr.mxu0 0.0
    %674 = vmatpush1.msra.mxu0 0.0
    %675 = vmatprep.subr.mxu0 0.0
    %676 = vmatpush1.msra.mxu0 0.0
    %677 = vmatprep.subr.mxu0 0.0
    %678 = vmatpush1.msra.mxu0 0.0
    %679 = vmatprep.subr.mxu0 0.0
    %680 = vmatpush1.msra.mxu0 0.0
    %681 = vmatprep.subr.mxu0 0.0
    %682 = vmatpush1.msra.mxu0 0.0
    %683 = vmatprep.subr.mxu0 0.0
    %684 = vmatpush1.msra.mxu0 0.0
    %685 = vmatprep.subr.mxu0 0.0
    %686 = vmatpush1.msra.mxu0 0.0
    %687 = vmatprep.subr.mxu0 0.0
    %688 = vmatpush1.msra.mxu0 0.0
    %689 = vmatprep.subr.mxu0 0.0
    %690 = vmatpush1.msra.mxu0 0.0
    %691 = vmatprep.subr.mxu0 0.0
    %692 = vmatpush1.msra.mxu0 0.0
    %693 = vmatprep.subr.mxu0 0.0
    %694 = vmatpush1.msra.mxu0 0.0
    %695 = vmatprep.subr.mxu0 0.0
    %696 = vmatpush1.msra.mxu0 0.0
    %697 = vmatprep.subr.mxu0 0.0
    %698 = vmatpush1.msra.mxu0 0.0
    %699 = vmatprep.subr.mxu0 0.0
    %700 = vmatpush1.msra.mxu0 0.0
    %701 = vmatprep.subr.mxu0 0.0
    %702 = vmatpush1.msra.mxu0 0.0
    %703 = vmatprep.subr.mxu0 0.0
    %704 = vmatpush1.msra.mxu0 0.0
    %705 = vmatprep.subr.mxu0 0.0
    %706 = vmatpush1.msra.mxu0 0.0
    %707 = vmatprep.subr.mxu0 0.0
    %708 = vmatpush1.msra.mxu0 0.0
    %709 = vmatprep.subr.mxu0 0.0
    %710 = vmatpush1.msra.mxu0 0.0
    %711 = vmatprep.subr.mxu0 0.0
    %712 = vmatpush1.msra.mxu0 0.0
    %713 = vmatprep.subr.mxu0 0.0
    %714 = vmatpush1.msra.mxu0 0.0
    %715 = vmatprep.subr.mxu0 0.0
    %716 = vmatpush1.msra.mxu0 0.0
    %717 = vmatprep.mubr.f32.mxu0 0.0
    %718 = vmatmul.mubr.f32.gmra.mrb[0].mxu0 %v651
    %v719 = vpop.f32.mrb[0].mxu0
    %v720 = vadd.f32 0.0, %v719
    %v721 = vpop.f32.mrb[0].mxu0
    %722 = vdwg.mxu0
    %v723 = vadd.f32 %v241, %v720
    %v724 = vxor.u32 %v723, 2147483648
    %v725 = vmul.f32 %v724, 1.442695
    %v726 = vpow.pop %v725
    %v727 = vadd.f32 %v726, 1.0
    %v728 = vrcp.pop %v727
    %v729 = vmul.f32 1.0, %v728
    %v730 = vtanh.pop %v723
    %v731 = vmul.f32 %v729, %v641
    %733 = vrot.lane.b32.xlu0 %v730, 64
    %v734 = vpop.permute.xlu0 %733
    %v736 = vmul.f32 %v729, %v734
    %738 = vrot.lane.b32.xlu0 %v736, 32
    %v739 = vpop.permute.xlu0 %738
    %v741 = vadd.f32 %v731, %v739
    %v742 = vtanh.pop %v741
    %744 = vrot.lane.b32.xlu0 %v742, 64
    %v745 = vpop.permute.xlu0 %744
    %v747 = vmul.f32 %v729, %v745
    %749 = vrot.lane.b32.xlu0 %v747, 32
    %v750 = vpop.permute.xlu0 %749
    %v751 = vsel %vm249, %v750, 0
    %753 = vmatprep.subr.mxu0 0.0
    %754 = vmatpush1.msra.mxu0 %v245
    %755 = vmatprep.subr.mxu0 0.0
    %756 = vmatpush1.msra.mxu0 %v246
    %757 = vmatprep.subr.mxu0 0.0
    %758 = vmatpush1.msra.mxu0 %v247
    %759 = vmatprep.subr.mxu0 0.0
    %760 = vmatpush1.msra.mxu0 %v248
    %761 = vmatprep.subr.mxu0 0.0
    %762 = vmatpush1.msra.mxu0 0.0
    %763 = vmatprep.subr.mxu0 0.0
    %764 = vmatpush1.msra.mxu0 0.0
    %765 = vmatprep.subr.mxu0 0.0
    %766 = vmatpush1.msra.mxu0 0.0
    %767 = vmatprep.subr.mxu0 0.0
    %768 = vmatpush1.msra.mxu0 0.0
    %769 = vmatprep.subr.mxu0 0.0
    %770 = vmatpush1.msra.mxu0 0.0
    %771 = vmatprep.subr.mxu0 0.0
    %772 = vmatpush1.msra.mxu0 0.0
    %773 = vmatprep.subr.mxu0 0.0
    %774 = vmatpush1.msra.mxu0 0.0
    %775 = vmatprep.subr.mxu0 0.0
    %776 = vmatpush1.msra.mxu0 0.0
    %777 = vmatprep.subr.mxu0 0.0
    %778 = vmatpush1.msra.mxu0 0.0
    %779 = vmatprep.subr.mxu0 0.0
    %780 = vmatpush1.msra.mxu0 0.0
    %781 = vmatprep.subr.mxu0 0.0
    %782 = vmatpush1.msra.mxu0 0.0
    %783 = vmatprep.subr.mxu0 0.0
    %784 = vmatpush1.msra.mxu0 0.0
    %785 = vmatprep.subr.mxu0 0.0
    %786 = vmatpush1.msra.mxu0 0.0
    %787 = vmatprep.subr.mxu0 0.0
    %788 = vmatpush1.msra.mxu0 0.0
    %789 = vmatprep.subr.mxu0 0.0
    %790 = vmatpush1.msra.mxu0 0.0
    %791 = vmatprep.subr.mxu0 0.0
    %792 = vmatpush1.msra.mxu0 0.0
    %793 = vmatprep.subr.mxu0 0.0
    %794 = vmatpush1.msra.mxu0 0.0
    %795 = vmatprep.subr.mxu0 0.0
    %796 = vmatpush1.msra.mxu0 0.0
    %797 = vmatprep.subr.mxu0 0.0
    %798 = vmatpush1.msra.mxu0 0.0
    %799 = vmatprep.subr.mxu0 0.0
    %800 = vmatpush1.msra.mxu0 0.0
    %801 = vmatprep.subr.mxu0 0.0
    %802 = vmatpush1.msra.mxu0 0.0
    %803 = vmatprep.subr.mxu0 0.0
    %804 = vmatpush1.msra.mxu0 0.0
    %805 = vmatprep.subr.mxu0 0.0
    %806 = vmatpush1.msra.mxu0 0.0
    %807 = vmatprep.subr.mxu0 0.0
    %808 = vmatpush1.msra.mxu0 0.0
    %809 = vmatprep.subr.mxu0 0.0
    %810 = vmatpush1.msra.mxu0 0.0
    %811 = vmatprep.subr.mxu0 0.0
    %812 = vmatpush1.msra.mxu0 0.0
    %813 = vmatprep.subr.mxu0 0.0
    %814 = vmatpush1.msra.mxu0 0.0
    %815 = vmatprep.subr.mxu0 0.0
    %816 = vmatpush1.msra.mxu0 0.0
    %817 = vmatprep.mubr.f32.mxu0 0.0
    %818 = vmatmul.mubr.f32.gmra.mrb[0].mxu0 %v751
    %v819 = vpop.f32.mrb[0].mxu0
    %v820 = vadd.f32 0.0, %v819
    %v821 = vpop.f32.mrb[0].mxu0
    %822 = vdwg.mxu0
    %v823 = vadd.f32 %v242, %v820
    %v824 = vxor.u32 %v823, 2147483648
    %v825 = vmul.f32 %v824, 1.442695
    %v826 = vpow.pop %v825
    %v827 = vadd.f32 %v826, 1.0
    %v828 = vrcp.pop %v827
    %v829 = vmul.f32 1.0, %v828
    %v830 = vtanh.pop %v823
    %v831 = vmul.f32 %v829, %v741
    %833 = vrot.lane.b32.xlu0 %v830, 64
    %v834 = vpop.permute.xlu0 %833
    %v836 = vmul.f32 %v829, %v834
    %838 = vrot.lane.b32.xlu0 %v836, 32
    %v839 = vpop.permute.xlu0 %838
    %v841 = vadd.f32 %v831, %v839
    %v842 = vtanh.pop %v841
    %844 = vrot.lane.b32.xlu0 %v842, 64
    %v845 = vpop.permute.xlu0 %844
    %v847 = vmul.f32 %v829, %v845
    %849 = vrot.lane.b32.xlu0 %v847, 32
    %v850 = vpop.permute.xlu0 %849
    %v851 = vsel %vm249, %v850, 0
    %853 = vmatprep.subr.mxu0 0.0
    %854 = vmatpush1.msra.mxu0 %v245
    %855 = vmatprep.subr.mxu0 0.0
    %856 = vmatpush1.msra.mxu0 %v246
    %857 = vmatprep.subr.mxu0 0.0
    %858 = vmatpush1.msra.mxu0 %v247
    %859 = vmatprep.subr.mxu0 0.0
    %860 = vmatpush1.msra.mxu0 %v248
    %861 = vmatprep.subr.mxu0 0.0
    %862 = vmatpush1.msra.mxu0 0.0
    %863 = vmatprep.subr.mxu0 0.0
    %864 = vmatpush1.msra.mxu0 0.0
    %865 = vmatprep.subr.mxu0 0.0
    %866 = vmatpush1.msra.mxu0 0.0
    %867 = vmatprep.subr.mxu0 0.0
    %868 = vmatpush1.msra.mxu0 0.0
    %869 = vmatprep.subr.mxu0 0.0
    %870 = vmatpush1.msra.mxu0 0.0
    %871 = vmatprep.subr.mxu0 0.0
    %872 = vmatpush1.msra.mxu0 0.0
    %873 = vmatprep.subr.mxu0 0.0
    %874 = vmatpush1.msra.mxu0 0.0
    %875 = vmatprep.subr.mxu0 0.0
    %876 = vmatpush1.msra.mxu0 0.0
    %877 = vmatprep.subr.mxu0 0.0
    %878 = vmatpush1.msra.mxu0 0.0
    %879 = vmatprep.subr.mxu0 0.0
    %880 = vmatpush1.msra.mxu0 0.0
    %881 = vmatprep.subr.mxu0 0.0
    %882 = vmatpush1.msra.mxu0 0.0
    %883 = vmatprep.subr.mxu0 0.0
    %884 = vmatpush1.msra.mxu0 0.0
    %885 = vmatprep.subr.mxu0 0.0
    %886 = vmatpush1.msra.mxu0 0.0
    %887 = vmatprep.subr.mxu0 0.0
    %888 = vmatpush1.msra.mxu0 0.0
    %889 = vmatprep.subr.mxu0 0.0
    %890 = vmatpush1.msra.mxu0 0.0
    %891 = vmatprep.subr.mxu0 0.0
    %892 = vmatpush1.msra.mxu0 0.0
    %893 = vmatprep.subr.mxu0 0.0
    %894 = vmatpush1.msra.mxu0 0.0
    %895 = vmatprep.subr.mxu0 0.0
    %896 = vmatpush1.msra.mxu0 0.0
    %897 = vmatprep.subr.mxu0 0.0
    %898 = vmatpush1.msra.mxu0 0.0
    %899 = vmatprep.subr.mxu0 0.0
    %900 = vmatpush1.msra.mxu0 0.0
    %901 = vmatprep.subr.mxu0 0.0
    %902 = vmatpush1.msra.mxu0 0.0
    %903 = vmatprep.subr.mxu0 0.0
    %904 = vmatpush1.msra.mxu0 0.0
    %905 = vmatprep.subr.mxu0 0.0
    %906 = vmatpush1.msra.mxu0 0.0
    %907 = vmatprep.subr.mxu0 0.0
    %908 = vmatpush1.msra.mxu0 0.0
    %909 = vmatprep.subr.mxu0 0.0
    %910 = vmatpush1.msra.mxu0 0.0
    %911 = vmatprep.subr.mxu0 0.0
    %912 = vmatpush1.msra.mxu0 0.0
    %913 = vmatprep.subr.mxu0 0.0
    %914 = vmatpush1.msra.mxu0 0.0
    %915 = vmatprep.subr.mxu0 0.0
    %916 = vmatpush1.msra.mxu0 0.0
    %917 = vmatprep.mubr.f32.mxu0 0.0
    %918 = vmatmul.mubr.f32.gmra.mrb[0].mxu0 %v851
    %v919 = vpop.f32.mrb[0].mxu0
    %v920 = vadd.f32 0.0, %v919
    %v921 = vpop.f32.mrb[0].mxu0
    %922 = vdwg.mxu0
    %v923 = vadd.f32 %v243, %v920
    %v924 = vxor.u32 %v923, 2147483648
    %v925 = vmul.f32 %v924, 1.442695
    %v926 = vpow.pop %v925
    %v927 = vadd.f32 %v926, 1.0
    %v928 = vrcp.pop %v927
    %v929 = vmul.f32 1.0, %v928
    %v930 = vtanh.pop %v923
    %v931 = vmul.f32 %v929, %v841
    %933 = vrot.lane.b32.xlu0 %v930, 64
    %v934 = vpop.permute.xlu0 %933
    %v936 = vmul.f32 %v929, %v934
    %938 = vrot.lane.b32.xlu0 %v936, 32
    %v939 = vpop.permute.xlu0 %938
    %v941 = vadd.f32 %v931, %v939
    %v942 = vtanh.pop %v941
    %944 = vrot.lane.b32.xlu0 %v942, 64
    %v945 = vpop.permute.xlu0 %944
    %v947 = vmul.f32 %v929, %v945
    %949 = vrot.lane.b32.xlu0 %v947, 32
    %v950 = vpop.permute.xlu0 %949
    %v951 = vsel %vm249, %v950, 0
    %953 = vmatprep.subr.mxu0 0.0
    %954 = vmatpush1.msra.mxu0 %v245
    %955 = vmatprep.subr.mxu0 0.0
    %956 = vmatpush1.msra.mxu0 %v246
    %957 = vmatprep.subr.mxu0 0.0
    %958 = vmatpush1.msra.mxu0 %v247
    %959 = vmatprep.subr.mxu0 0.0
    %960 = vmatpush1.msra.mxu0 %v248
    %961 = vmatprep.subr.mxu0 0.0
    %962 = vmatpush1.msra.mxu0 0.0
    %963 = vmatprep.subr.mxu0 0.0
    %964 = vmatpush1.msra.mxu0 0.0
    %965 = vmatprep.subr.mxu0 0.0
    %966 = vmatpush1.msra.mxu0 0.0
    %967 = vmatprep.subr.mxu0 0.0
    %968 = vmatpush1.msra.mxu0 0.0
    %969 = vmatprep.subr.mxu0 0.0
    %970 = vmatpush1.msra.mxu0 0.0
    %971 = vmatprep.subr.mxu0 0.0
    %972 = vmatpush1.msra.mxu0 0.0
    %973 = vmatprep.subr.mxu0 0.0
    %974 = vmatpush1.msra.mxu0 0.0
    %975 = vmatprep.subr.mxu0 0.0
    %976 = vmatpush1.msra.mxu0 0.0
    %977 = vmatprep.subr.mxu0 0.0
    %978 = vmatpush1.msra.mxu0 0.0
    %979 = vmatprep.subr.mxu0 0.0
    %980 = vmatpush1.msra.mxu0 0.0
    %981 = vmatprep.subr.mxu0 0.0
    %982 = vmatpush1.msra.mxu0 0.0
    %983 = vmatprep.subr.mxu0 0.0
    %984 = vmatpush1.msra.mxu0 0.0
    %985 = vmatprep.subr.mxu0 0.0
    %986 = vmatpush1.msra.mxu0 0.0
    %987 = vmatprep.subr.mxu0 0.0
    %988 = vmatpush1.msra.mxu0 0.0
    %989 = vmatprep.subr.mxu0 0.0
    %990 = vmatpush1.msra.mxu0 0.0
    %991 = vmatprep.subr.mxu0 0.0
    %992 = vmatpush1.msra.mxu0 0.0
    %993 = vmatprep.subr.mxu0 0.0
    %994 = vmatpush1.msra.mxu0 0.0
    %995 = vmatprep.subr.mxu0 0.0
    %996 = vmatpush1.msra.mxu0 0.0
    %997 = vmatprep.subr.mxu0 0.0
    %998 = vmatpush1.msra.mxu0 0.0
    %999 = vmatprep.subr.mxu0 0.0
    %1000 = vmatpush1.msra.mxu0 0.0
    %1001 = vmatprep.subr.mxu0 0.0
    %1002 = vmatpush1.msra.mxu0 0.0
    %1003 = vmatprep.subr.mxu0 0.0
    %1004 = vmatpush1.msra.mxu0 0.0
    %1005 = vmatprep.subr.mxu0 0.0
    %1006 = vmatpush1.msra.mxu0 0.0
    %1007 = vmatprep.subr.mxu0 0.0
    %1008 = vmatpush1.msra.mxu0 0.0
    %1009 = vmatprep.subr.mxu0 0.0
    %1010 = vmatpush1.msra.mxu0 0.0
    %1011 = vmatprep.subr.mxu0 0.0
    %1012 = vmatpush1.msra.mxu0 0.0
    %1013 = vmatprep.subr.mxu0 0.0
    %1014 = vmatpush1.msra.mxu0 0.0
    %1015 = vmatprep.subr.mxu0 0.0
    %1016 = vmatpush1.msra.mxu0 0.0
    %1017 = vmatprep.mubr.f32.mxu0 0.0
    %1018 = vmatmul.mubr.f32.gmra.mrb[0].mxu0 %v951
    %v1019 = vpop.f32.mrb[0].mxu0
    %v1020 = vadd.f32 0.0, %v1019
    %v1021 = vpop.f32.mrb[0].mxu0
    %1022 = vdwg.mxu0
    %v1023 = vadd.f32 %v244, %v1020
    %v1024 = vxor.u32 %v1023, 2147483648
    %v1025 = vmul.f32 %v1024, 1.442695
    %v1026 = vpow.pop %v1025
    %v1027 = vadd.f32 %v1026, 1.0
    %v1028 = vrcp.pop %v1027
    %v1029 = vmul.f32 1.0, %v1028
    %v1030 = vtanh.pop %v1023
    %v1031 = vmul.f32 %v1029, %v941
    %1033 = vrot.lane.b32.xlu0 %v1030, 64
    %v1034 = vpop.permute.xlu0 %1033
    %v1036 = vmul.f32 %v1029, %v1034
    %1038 = vrot.lane.b32.xlu0 %v1036, 32
    %v1039 = vpop.permute.xlu0 %1038
    %v1041 = vadd.f32 %v1031, %v1039
    %1043 = vrot.lane.b32.xlu0 %v1041, 96
    %v1044 = vpop.permute.xlu0 %1043
    %1046 = vst.msk [vmem:[#allocation2] sm:$0xff] %vm249, %v1044
    // Predicated region
    $region26: #{tpu_custom_call.1} parent=1 // pred_check
      _
    $region27: #{tpu_custom_call.1} parent=1 // pred_check_branch
      %1048 = sbr.rel (0) target = $region29
    $region28: #{tpu_custom_call.1} parent=1 // pred_region
      %s1050 = ssub.s32 128, 128
      %1051 = vsyncadd [#allocation3], %s1050
      %s1053 = sshll.u32 [#allocation2], 4
      %s1054 = int_to_ptr.vmem [resolvable:$true] %s1053
      %1056 = dma.vmem_to_hbm [thread:$0]  %s1054, 128, %s6, [#allocation3]
    $region29: #{tpu_custom_call.1} parent=1 // pred_fallthru
      _
    // Predicated region
    $region30: #{tpu_custom_call.1} parent=1 // pred_check
      _
    $region31: #{tpu_custom_call.1} parent=1 // pred_check_branch
      %1058 = sbr.rel (0) target = $region33
    $region32: #{tpu_custom_call.1} parent=1 // pred_region
      %1059 = dma.done [#allocation3], 128
    $region33: #{tpu_custom_call.1} parent=1 // pred_fallthru
      _
    %1060 = vsyncpa [#allocation3], 1

</llo_original>
